<compile_context>
chip_gen: v5e
topology: v5e:2x2
jax: 0.10.0
libtpu: 0.0.40
codegen_flags: <defaults>
</compile_context>

<pallas_src>
import math
import functools

import jax
import jax.numpy as jnp
from jax.experimental import pallas as pl
from jax.experimental.pallas import tpu as pltpu


def _round_up(x, m):
    return (x + m - 1) // m * m


def _pick_tile(n_pad, target):
    """Largest tile <= target that divides n_pad (n_pad is a multiple of 128)."""
    t = min(target, n_pad)
    while n_pad % t != 0:
        t -= 128
    return t


def _gcn_kernel(*refs, add_bias):
    if add_bias:
        x_ref, adj_ref, w_ref, b_ref, o_ref, acc_ref = refs
    else:
        x_ref, adj_ref, w_ref, o_ref, acc_ref = refs
        b_ref = None

    k = pl.program_id(2)

    @pl.when(k == 0)
    def _():
        acc_ref[...] = jnp.zeros_like(acc_ref)

    x = x_ref[0]          # (TK, F_in_p)  reduction-row slice of this batch's features
    adj = adj_ref[0]      # (TM, TK)      row/reduction tile of the adjacency
    w = w_ref[...]        # (F_in_p, F_out_p)

    # support_k = x_k @ W, accumulated in f32 on the MXU, then kept at input
    # precision so the (much larger) adjacency matmul runs at bf16 rate when
    # the caller uses bf16 operands.
    support = jnp.dot(x, w, preferred_element_type=jnp.float32).astype(x.dtype)
    acc_ref[...] += jnp.dot(adj, support, preferred_element_type=jnp.float32)

    @pl.when(k == pl.num_programs(2) - 1)
    def _():
        out = acc_ref[...]
        if add_bias:
            out = out + b_ref[...]          # (1, F_out_p) broadcast, f32
        o_ref[0] = out.astype(o_ref.dtype)


def graph_convolution(x, adj, weight, bias=None, *, tm_target=256, tk_target=512):
    """Pallas implementation of GraphConvolution.forward.

    x:      (B, N, F_in)
    adj:    (B, N, N)
    weight: (F_in, F_out)
    bias:   (1, 1, F_out) or None
    returns (B, N, F_out) in x.dtype
    """
    B, N, F_in = x.shape
    F_out = weight.shape[1]

    compute_dtype = x.dtype
    out_dtype = x.dtype
    elt = jnp.dtype(compute_dtype).itemsize
    out_elt = jnp.dtype(out_dtype).itemsize

    # Padded, lane/sublane-friendly shapes (zero padding keeps the math exact).
    N_pad = _round_up(N, 128)
    F_in_p = _round_up(F_in, 8)
    F_out_p = _round_up(F_out, 128)

    TM = _pick_tile(N_pad, tm_target)
    TK = _pick_tile(N_pad, tk_target)
    n_i = N_pad // TM
    n_k = N_pad // TK

    x_p = jnp.zeros((B, N_pad, F_in_p), compute_dtype)
    x_p = x_p.at[:, :N, :F_in].set(x.astype(compute_dtype))
    adj_p = jnp.zeros((B, N_pad, N_pad), compute_dtype)
    adj_p = adj_p.at[:, :N, :N].set(adj.astype(compute_dtype))
    w_p = jnp.zeros((F_in_p, F_out_p), compute_dtype)
    w_p = w_p.at[:F_in, :F_out].set(weight.astype(compute_dtype))

    add_bias = bias is not None
    operands = [x_p, adj_p, w_p]
    in_specs = [
        pl.BlockSpec((1, TK, F_in_p), lambda b, i, k: (b, k, 0)),     # x (reduction rows)
        pl.BlockSpec((1, TM, TK), lambda b, i, k: (b, i, k)),         # adj tile
        pl.BlockSpec((F_in_p, F_out_p), lambda b, i, k: (0, 0)),      # weight (resident)
    ]
    if add_bias:
        b_p = jnp.zeros((1, F_out_p), jnp.float32)
        b_p = b_p.at[:, :F_out].set(bias.reshape(1, F_out).astype(jnp.float32))
        operands.append(b_p)
        in_specs.append(pl.BlockSpec((1, F_out_p), lambda b, i, k: (0, 0)))

    # VMEM budget: double-buffered tiles + f32 accumulator, generous headroom,
    # capped well below v7x's 64 MiB physical VMEM.
    tile_bytes = (
        2 * TM * TK * elt            # adj
        + 2 * TK * F_in_p * elt      # x
        + 2 * F_in_p * F_out_p * elt # weight
        + 2 * F_out_p * 4            # bias
        + 2 * TM * F_out_p * out_elt # output
        + TM * F_out_p * 4           # accumulator
    )
    vmem_limit = int(min(48 * 1024 * 1024, max(16 * 1024 * 1024, 2 * tile_bytes)))

    cost = pl.CostEstimate(
        flops=2 * B * N * F_in * F_out + 2 * B * N * N * F_out,
        transcendentals=0,
        bytes_accessed=(x.size + adj.size + weight.size) * elt
        + B * N * F_out * out_elt,
    )

    out_p = pl.pallas_call(
        functools.partial(_gcn_kernel, add_bias=add_bias),
        out_shape=jax.ShapeDtypeStruct((B, N_pad, F_out_p), out_dtype),
        grid_spec=pltpu.PrefetchScalarGridSpec(
            num_scalar_prefetch=0,
            grid=(B, n_i, n_k),
            in_specs=in_specs,
            out_specs=pl.BlockSpec((1, TM, F_out_p), lambda b, i, k: (b, i, 0)),
            scratch_shapes=[pltpu.VMEM((TM, F_out_p), jnp.float32)],
        ),
        compiler_params=pltpu.CompilerParams(
            dimension_semantics=("parallel", "parallel", "arbitrary"),
            vmem_limit_bytes=vmem_limit,
        ),
        cost_estimate=cost,
    )(*operands)

    return out_p[:, :N, :F_out]


def init_graph_convolution_params(key, in_features, out_features, use_bias=False):
    """Matches reset_parameters: uniform(-stdv, stdv), stdv = 1/sqrt(out_features)."""
    stdv = 1.0 / math.sqrt(out_features)
    k_w, k_b = jax.random.split(key)
    weight = jax.random.uniform(
        k_w, (in_features, out_features), minval=-stdv, maxval=stdv,
        dtype=jnp.float32)
    bias = None
    if use_bias:
        bias = jax.random.uniform(
            k_b, (1, 1, out_features), minval=-stdv, maxval=stdv,
            dtype=jnp.float32)
    return weight, bias


if __name__ == "__main__":
    key = jax.random.PRNGKey(0)
    k_x, k_adj, k_param = jax.random.split(key, 3)

    B, N, F_in, F_out = 2, 8, 16, 32

    x = jax.random.normal(k_x, (B, N, F_in), dtype=jnp.float32)
    adj = jax.random.uniform(k_adj, (B, N, N), dtype=jnp.float32)
    weight, bias = init_graph_convolution_params(k_param, F_in, F_out, use_bias=True)

    # --- f32 + bias path ---
    out = jax.block_until_ready(graph_convolution(x, adj, weight, bias))
    ref = jnp.matmul(adj, jnp.matmul(x, weight)) + bias
    assert out.shape == (B, N, F_out)
    assert out.dtype == x.dtype
    assert jnp.allclose(out, ref, atol=1e-5, rtol=1e-5)

    # --- f32, no-bias path (exercises the specialized kernel) ---
    out_nb = jax.block_until_ready(graph_convolution(x, adj, weight, None))
    ref_nb = jnp.matmul(adj, jnp.matmul(x, weight))
    assert jnp.allclose(out_nb, ref_nb, atol=1e-5, rtol=1e-5)

    # --- bf16 smoke test: dtype passthrough, loose numerical check ---
    x_bf = x.astype(jnp.bfloat16)
    adj_bf = adj.astype(jnp.bfloat16)
    out_bf = jax.block_until_ready(graph_convolution(x_bf, adj_bf, weight, bias))
    assert out_bf.dtype == jnp.bfloat16
    ref_bf = jnp.matmul(adj_bf.astype(jnp.float32),
                        jnp.matmul(x_bf.astype(jnp.float32),
                                   weight.astype(jnp.bfloat16).astype(jnp.float32))) + bias
    assert jnp.allclose(out_bf.astype(jnp.float32), ref_bf, atol=5e-2, rtol=5e-2)

    print("KERNEL_OK")
</pallas_src>

<mosaic_0001>
module attributes {stable_mosaic.version = 11 : i64} {
  func.func @_gcn_kernel(%arg0: i32, %arg1: i32, %arg2: i32, %arg3: memref<1x128x16xf32, #tpu.memory_space<vmem>>, %arg4: memref<1x128x128xf32, #tpu.memory_space<vmem>>, %arg5: memref<16x128xf32, #tpu.memory_space<vmem>>, %arg6: memref<1x128xf32, #tpu.memory_space<vmem>>, %arg7: memref<1x128x128xf32, #tpu.memory_space<vmem>>, %arg8: memref<128x128xf32, #tpu.memory_space<vmem>>) attributes {dimension_semantics = [#tpu.dimension_semantics<parallel>, #tpu.dimension_semantics<parallel>, #tpu.dimension_semantics<arbitrary>], iteration_bounds = array<i64: 2, 1, 1>, scalar_prefetch = 0 : i64, scratch_operands = 1 : i64, tpu.core_type = #tpu.core_type<tc>, window_params = [{transform_indices = @transform_0, window_bounds = array<i64: 1, 128, 16>}, {transform_indices = @transform_1, window_bounds = array<i64: 1, 128, 128>}, {pipeline_mode = #tpu.pipeline_mode<synchronous>, transform_indices = @transform_2, window_bounds = array<i64: 16, 128>}, {pipeline_mode = #tpu.pipeline_mode<synchronous>, transform_indices = @transform_3, window_bounds = array<i64: 1, 128>}, {transform_indices = @transform_4, window_bounds = array<i64: 1, 128, 128>}]} {
    %c0_i32 = arith.constant 0 : i32
    %0 = arith.cmpi eq, %arg2, %c0_i32 : i32
    %1 = arith.extui %0 : i1 to i32
    %c0_i32_0 = arith.constant 0 : i32
    %2 = arith.cmpi ne, %1, %c0_i32_0 : i32
    scf.if %2 {
      %cst_15 = arith.constant 0.000000e+00 : f32
      %16 = vector.broadcast %cst_15 : f32 to vector<128x128xf32>
      %c0_16 = arith.constant 0 : index
      %c0_17 = arith.constant 0 : index
      %17 = vector.load %arg8[%c0_16, %c0_17] : memref<128x128xf32, #tpu.memory_space<vmem>>, vector<128x128xf32>
      tpu.vector_store %arg8[%c0_16, %c0_17], %16 {strides = array<i32>} : memref<128x128xf32, #tpu.memory_space<vmem>>, vector<128x128xf32>,
    } else {
    }
    %c0 = arith.constant 0 : index
    %c0_1 = arith.constant 0 : index
    %c0_2 = arith.constant 0 : index
    %3 = vector.load %arg3[%c0, %c0_1, %c0_2] : memref<1x128x16xf32, #tpu.memory_space<vmem>>, vector<1x128x16xf32>
    %4 = vector.shape_cast %3 : vector<1x128x16xf32> to vector<128x16xf32>
    %c0_3 = arith.constant 0 : index
    %c0_4 = arith.constant 0 : index
    %c0_5 = arith.constant 0 : index
    %5 = vector.load %arg4[%c0_3, %c0_4, %c0_5] : memref<1x128x128xf32, #tpu.memory_space<vmem>>, vector<1x128x128xf32>
    %6 = vector.shape_cast %5 : vector<1x128x128xf32> to vector<128x128xf32>
    %c0_6 = arith.constant 0 : index
    %c0_7 = arith.constant 0 : index
    %7 = vector.load %arg5[%c0_6, %c0_7] : memref<16x128xf32, #tpu.memory_space<vmem>>, vector<16x128xf32>
    %cst = arith.constant dense<0.000000e+00> : vector<128x128xf32>
    %8 = tpu.matmul %4, %7, %cst {dimension_numbers = #tpu.dot_dimension_numbers<[1], [0], [0], [1], [0, 0, 1, 1], [], []>} : vector<128x16xf32>, vector<16x128xf32>, vector<128x128xf32> -> vector<128x128xf32>
    %c0_8 = arith.constant 0 : index
    %c0_9 = arith.constant 0 : index
    %9 = vector.load %arg8[%c0_8, %c0_9] : memref<128x128xf32, #tpu.memory_space<vmem>>, vector<128x128xf32>
    %cst_10 = arith.constant dense<0.000000e+00> : vector<128x128xf32>
    %10 = tpu.matmul %6, %8, %cst_10 {dimension_numbers = #tpu.dot_dimension_numbers<[1], [0], [0], [1], [0, 0, 1, 1], [], []>} : vector<128x128xf32>, vector<128x128xf32>, vector<128x128xf32> -> vector<128x128xf32>
    %11 = arith.addf %9, %10 : vector<128x128xf32>
    %c0_11 = arith.constant 0 : index
    %c0_12 = arith.constant 0 : index
    %12 = vector.load %arg8[%c0_11, %c0_12] : memref<128x128xf32, #tpu.memory_space<vmem>>, vector<128x128xf32>
    tpu.vector_store %arg8[%c0_11, %c0_12], %11 {strides = array<i32>} : memref<128x128xf32, #tpu.memory_space<vmem>>, vector<128x128xf32>,
    %c0_i32_13 = arith.constant 0 : i32
    %13 = arith.cmpi eq, %arg2, %c0_i32_13 : i32
    %14 = arith.extui %13 : i1 to i32
    %c0_i32_14 = arith.constant 0 : i32
    %15 = arith.cmpi ne, %14, %c0_i32_14 : i32
    scf.if %15 {
      %c0_15 = arith.constant 0 : index
      %c0_16 = arith.constant 0 : index
      %16 = vector.load %arg8[%c0_15, %c0_16] : memref<128x128xf32, #tpu.memory_space<vmem>>, vector<128x128xf32>
      %c0_17 = arith.constant 0 : index
      %c0_18 = arith.constant 0 : index
      %17 = vector.load %arg6[%c0_17, %c0_18] : memref<1x128xf32, #tpu.memory_space<vmem>>, vector<1x128xf32>
      %18 = vector.broadcast %17 : vector<1x128xf32> to vector<128x128xf32>
      %19 = arith.addf %16, %18 : vector<128x128xf32>
      %c0_19 = arith.constant 0 : index
      %c0_20 = arith.constant 0 : index
      %c0_21 = arith.constant 0 : index
      %20 = vector.load %arg7[%c0_19, %c0_20, %c0_21] : memref<1x128x128xf32, #tpu.memory_space<vmem>>, vector<1x128x128xf32>
      %21 = vector.shape_cast %20 : vector<1x128x128xf32> to vector<128x128xf32>
      %22 = vector.shape_cast %19 : vector<128x128xf32> to vector<1x128x128xf32>
      tpu.vector_store %arg7[%c0_19, %c0_20, %c0_21], %22 {strides = array<i32>} : memref<1x128x128xf32, #tpu.memory_space<vmem>>, vector<1x128x128xf32>,
    } else {
    }
    return
  }
  func.func @transform_0(%arg0: i32, %arg1: i32, %arg2: i32) -> (i32, i32, i32) {
    %c0_i32 = arith.constant 0 : i32
    %c0_i32_0 = arith.constant 0 : i32
    return %arg0, %arg2, %c0_i32 : i32, i32, i32
  }
  func.func @transform_1(%arg0: i32, %arg1: i32, %arg2: i32) -> (i32, i32, i32) {
    %c0_i32 = arith.constant 0 : i32
    return %arg0, %arg1, %arg2 : i32, i32, i32
  }
  func.func @transform_2(%arg0: i32, %arg1: i32, %arg2: i32) -> (i32, i32) {
    %c0_i32 = arith.constant 0 : i32
    %c0_i32_0 = arith.constant 0 : i32
    %c0_i32_1 = arith.constant 0 : i32
    return %c0_i32, %c0_i32_0 : i32, i32
  }
  func.func @transform_3(%arg0: i32, %arg1: i32, %arg2: i32) -> (i32, i32) {
    %c0_i32 = arith.constant 0 : i32
    %c0_i32_0 = arith.constant 0 : i32
    %c0_i32_1 = arith.constant 0 : i32
    return %c0_i32, %c0_i32_0 : i32, i32
  }
  func.func @transform_4(%arg0: i32, %arg1: i32, %arg2: i32) -> (i32, i32, i32) {
    %c0_i32 = arith.constant 0 : i32
    %c0_i32_0 = arith.constant 0 : i32
    return %arg0, %arg1, %c0_i32 : i32, i32, i32
  }
}

</mosaic_0001>

<llo_original>
// kernel: tpu_custom_call.1
$region0: #{tpu_custom_call.1}
  #allocation0 [shape = 'u32[]', space=smem, size = 0x4, offset = 0x4, fixed_abs, tag = 'smem constant byte address 0x4 - core index']
  #allocation1 [shape = 'u32[72,128]{1,0:T(1,128)}', space=vmem, size = 0x9000, scoped, tag = 'internal scratch']
  #allocation2 [shape = 'f32[128,128]{1,0:T(8,128)}', space=vmem, size = 0x10000, scoped, tag = 'scratch operand']
  %s0 = inlined_call_operand.vmem [shape: f32[2,128,16], index: 0, kind: input, shape index: {}]
  %s1 = inlined_call_operand.vmem [shape: f32[2,128,128], index: 1, kind: input, shape index: {}]
  %s2 = inlined_call_operand.vmem [shape: f32[16,128], index: 2, kind: input, shape index: {}]
  %s3 = inlined_call_operand.vmem [shape: f32[1,128], index: 3, kind: input, shape index: {}]
  %s4 = inlined_call_operand.hbm [shape: f32[2,128,128], index: 4, kind: output, shape index: {}]
  %s5 = sld [smem:[#allocation0]]
  $region57: #{tpu_custom_call.1} parent=0
    _
  %s7 = ssub.s32 1, %s5
  %s8 = scalar_select 0, %s7, %s5
  $region1: #{tpu_custom_call.1} parent=0
    #allocation3 [shape = 'u8[131072]{0}', space=vmem, size = 0x20000, scoped, tag = 'output window, operand 0']
    #allocation4 [shape = 's32[2]{0}', space=sflag, size = 0x8, scoped, tag = 'scoped memory for tpu_custom_call.1']
    %9 = vsyncpa [#allocation4], 0
    %s10 = scalar_lea.sflag [#allocation4], 1
    %11 = vsyncpa %s10, 0
    loop: start=0, step=1, limit=4
    $region2: #{tpu_custom_call.1} parent=1 // loop_pre_header
      _
    $region3: #{tpu_custom_call.1} parent=1 // loop_header
      %s13 = sphi 0, %s17
      %p14 = scmp.ge.s32.totalorder %s13, 4
      %s20 = sphi 0, %s39
      %s21 = sphi 0, %s35
      %s22 = sphi 0, %s31
      %s23 = sphi 0, %s20
      %s24 = sphi 0, %s21
      %s25 = sphi 0, %s22
      %s26 = sphi 0, %s23
      %s27 = sphi 0, %s24
      %s28 = sphi 0, %s25
      %s44 = sphi 0, %s46
      %s47 = sphi 0, %s44
      %s48 = sphi 0, %s47
      %s64 = sphi 0, %s48
      %s74 = sphi 0, %s76
      %s77 = sphi 0, %s74
      %s78 = sphi 0, %s77
      %s94 = sphi 0, %s78
      %s98 = sphi 0, %s98
      %s100 = sphi 0, %s98
      %s101 = sphi 0, %s100
      %s115 = sphi 0, %s101
      %s119 = sphi 0, %s119
      %s121 = sphi 0, %s119
      %s122 = sphi 0, %s121
      %s136 = sphi 0, %s122
      %s144 = sphi 0, %s146
      %s147 = sphi 0, %s144
      %s148 = sphi 0, %s147
      %s164 = sphi 0, %s148
    $region4: #{tpu_custom_call.1} parent=1 // loop_header_branch
      %16 = sbr.rel (%p14) target = $region8
    $region5: #{tpu_custom_call.1} parent=1 // loop_body
      %s18 = ssub.s32 %s13, 1
      %s19 = ssub.s32 %s13, 2
      %s29 = sadd.s32 1, %s22
      %p30 = scmp.ge.s32.totalorder %s29, 1
      %s31 = scalar_select %p30, 0, %s29
      %s32 = sadd.s32 1, %s21
      %s33 = scalar_select %p30, %s32, %s21
      %p34 = scmp.ge.s32.totalorder %s33, 1
      %s35 = scalar_select %p34, 0, %s33
      %s36 = sadd.s32 1, %s20
      %s37 = scalar_select %p34, %s36, %s20
      %p38 = scmp.ge.s32.totalorder %s37, 2
      %s39 = scalar_select %p38, 0, %s37
      %s40 = ssub.s32 %s20, %s39
      %s41 = ssub.s32 %s22, %s31
      %s42 = sor.u32 %s40, %s41
      %p43 = scmp.eq.s32.totalorder %s42, 0
      %s45 = sadd.s32 %s44, 1
      %s46 = scalar_select %p43, %s44, %s45
      %p49 = pneg %p43
      %p50 = scmp.eq.s32.totalorder %s13, 1
      %p51 = por %p49, %p50
      %p52 = scmp.ne.s32.totalorder %s44, %s47
      %p53 = scmp.eq.s32.totalorder %s13, 0
      %p54 = por %p52, %p53
      %p55 = scmp.ne.s32.totalorder %s44, %s47
      %p56 = scmp.eq.s32.totalorder %s18, 1
      %p57 = por %p55, %p56
      %p58 = scmp.ne.s32.totalorder %s47, %s48
      %p59 = scmp.eq.s32.totalorder %s18, 0
      %p60 = por %p58, %p59
      %p61 = scmp.ne.s32.totalorder %s47, %s48
      %p62 = scmp.eq.s32.totalorder %s19, 1
      %p63 = por %p61, %p62
      %p65 = scmp.ne.s32.totalorder %s48, %s64
      %p66 = scmp.eq.s32.totalorder %s19, 0
      %p67 = por %p65, %p66
      %s68 = ssub.s32 %s20, %s39
      %s69 = ssub.s32 %s21, %s35
      %s70 = sor.u32 %s68, %s69
      %s71 = ssub.s32 %s22, %s31
      %s72 = sor.u32 %s70, %s71
      %p73 = scmp.eq.s32.totalorder %s72, 0
      %s75 = sadd.s32 %s74, 1
      %s76 = scalar_select %p73, %s74, %s75
      %p79 = pneg %p73
      %p80 = scmp.eq.s32.totalorder %s13, 1
      %p81 = por %p79, %p80
      %p82 = scmp.ne.s32.totalorder %s74, %s77
      %p83 = scmp.eq.s32.totalorder %s13, 0
      %p84 = por %p82, %p83
      %p85 = scmp.ne.s32.totalorder %s74, %s77
      %p86 = scmp.eq.s32.totalorder %s18, 1
      %p87 = por %p85, %p86
      %p88 = scmp.ne.s32.totalorder %s77, %s78
      %p89 = scmp.eq.s32.totalorder %s18, 0
      %p90 = por %p88, %p89
      %p91 = scmp.ne.s32.totalorder %s77, %s78
      %p92 = scmp.eq.s32.totalorder %s19, 1
      %p93 = por %p91, %p92
      %p95 = scmp.ne.s32.totalorder %s78, %s94
      %p96 = scmp.eq.s32.totalorder %s19, 0
      %p97 = por %p95, %p96
      %s99 = sadd.s32 %s98, 1
      %p102 = scmp.eq.s32.totalorder %s13, 1
      %p103 = scmp.ne.s32.totalorder %s98, %s100
      %p104 = scmp.eq.s32.totalorder %s13, 0
      %p105 = por %p103, %p104
      %p106 = scmp.ne.s32.totalorder %s98, %s100
      %p107 = scmp.eq.s32.totalorder %s18, 1
      %p108 = por %p106, %p107
      %p109 = scmp.ne.s32.totalorder %s100, %s101
      %p110 = scmp.eq.s32.totalorder %s18, 0
      %p111 = por %p109, %p110
      %p112 = scmp.ne.s32.totalorder %s100, %s101
      %p113 = scmp.eq.s32.totalorder %s19, 1
      %p114 = por %p112, %p113
      %p116 = scmp.ne.s32.totalorder %s101, %s115
      %p117 = scmp.eq.s32.totalorder %s19, 0
      %p118 = por %p116, %p117
      %s120 = sadd.s32 %s119, 1
      %p123 = scmp.eq.s32.totalorder %s13, 1
      %p124 = scmp.ne.s32.totalorder %s119, %s121
      %p125 = scmp.eq.s32.totalorder %s13, 0
      %p126 = por %p124, %p125
      %p127 = scmp.ne.s32.totalorder %s119, %s121
      %p128 = scmp.eq.s32.totalorder %s18, 1
      %p129 = por %p127, %p128
      %p130 = scmp.ne.s32.totalorder %s121, %s122
      %p131 = scmp.eq.s32.totalorder %s18, 0
      %p132 = por %p130, %p131
      %p133 = scmp.ne.s32.totalorder %s121, %s122
      %p134 = scmp.eq.s32.totalorder %s19, 1
      %p135 = por %p133, %p134
      %p137 = scmp.ne.s32.totalorder %s122, %s136
      %p138 = scmp.eq.s32.totalorder %s19, 0
      %p139 = por %p137, %p138
      %s140 = ssub.s32 %s20, %s39
      %s141 = ssub.s32 %s21, %s35
      %s142 = sor.u32 %s140, %s141
      %p143 = scmp.eq.s32.totalorder %s142, 0
      %s145 = sadd.s32 %s144, 1
      %s146 = scalar_select %p143, %s144, %s145
      %p149 = pneg %p143
      %p150 = scmp.eq.s32.totalorder %s13, 1
      %p151 = por %p149, %p150
      %p152 = scmp.ne.s32.totalorder %s144, %s147
      %p153 = scmp.eq.s32.totalorder %s13, 0
      %p154 = por %p152, %p153
      %p155 = scmp.ne.s32.totalorder %s144, %s147
      %p156 = scmp.eq.s32.totalorder %s18, 1
      %p157 = por %p155, %p156
      %p158 = scmp.ne.s32.totalorder %s147, %s148
      %p159 = scmp.eq.s32.totalorder %s18, 0
      %p160 = por %p158, %p159
      %p161 = scmp.ne.s32.totalorder %s147, %s148
      %p162 = scmp.eq.s32.totalorder %s19, 1
      %p163 = por %p161, %p162
      %p165 = scmp.ne.s32.totalorder %s148, %s164
      %p166 = scmp.eq.s32.totalorder %s19, 0
      %p167 = por %p165, %p166
      %p168 = scmp.le.s32.totalorder 1, %s13
      %p169 = scmp.lt.s32.totalorder %s13, 3
      %p170 = pnand %p168, %p169
      %p171 = pneg %p170
      // Predicated region
      $region9: #{tpu_custom_call.1} parent=5 // pred_check
        _
      $region10: #{tpu_custom_call.1} parent=5 // pred_check_branch
        %173 = sbr.rel (%p170) target = $region12
      $region11: #{tpu_custom_call.1} parent=5 // pred_region
        %s174 = ssub.s32 %s13, 1
        // Predicated region
        $region13: #{tpu_custom_call.1} parent=11 // pred_check
          %p175 = pneg %p111
        $region14: #{tpu_custom_call.1} parent=11 // pred_check_branch
          %177 = sbr.rel (%p175) target = $region16
        $region15: #{tpu_custom_call.1} parent=11 // pred_region
          _
        $region16: #{tpu_custom_call.1} parent=11 // pred_fallthru
          _
        // Predicated region
        $region17: #{tpu_custom_call.1} parent=11 // pred_check
          %p178 = pneg %p132
        $region18: #{tpu_custom_call.1} parent=11 // pred_check_branch
          %180 = sbr.rel (%p178) target = $region20
        $region19: #{tpu_custom_call.1} parent=11 // pred_region
          _
        $region20: #{tpu_custom_call.1} parent=11 // pred_fallthru
          _
      $region12: #{tpu_custom_call.1} parent=5 // pred_fallthru
        _
      %p181 = scmp.lt.s32.totalorder %s13, 2
      // Predicated region
      $region21: #{tpu_custom_call.1} parent=5 // pred_check
        %p182 = pneg %p181
      $region22: #{tpu_custom_call.1} parent=5 // pred_check_branch
        %184 = sbr.rel (%p182) target = $region24
      $region23: #{tpu_custom_call.1} parent=5 // pred_region
        // Predicated region
        $region25: #{tpu_custom_call.1} parent=23 // pred_check
          %p185 = pneg %p54
        $region26: #{tpu_custom_call.1} parent=23 // pred_check_branch
          %187 = sbr.rel (%p185) target = $region28
        $region27: #{tpu_custom_call.1} parent=23 // pred_region
          %s188 = smul.u32 16, %s22
          %p189 = scmp.lt.s32.totalorder %s20, 1
          %s190 = scalar_select %p189, %s20, 1
          %p191 = scmp.lt.s32.totalorder %s188, 15
          %s192 = scalar_select %p191, %s188, 15
          %s193 = smul.addr %s190, 16
          %s194 = sadd.s32 %s192, %s193
          %s195 = smul.addr %s194, 8
          %s196 = scalar_lea.vmem %s0, %s195
          %s197 = smul.u32 16, %s22
        $region28: #{tpu_custom_call.1} parent=23 // pred_fallthru
          _
        // Predicated region
        $region29: #{tpu_custom_call.1} parent=23 // pred_check
          %p198 = pneg %p84
        $region30: #{tpu_custom_call.1} parent=23 // pred_check_branch
          %200 = sbr.rel (%p198) target = $region32
        $region31: #{tpu_custom_call.1} parent=23 // pred_region
          %s201 = smul.u32 16, %s21
          %p202 = scmp.lt.s32.totalorder %s20, 1
          %s203 = scalar_select %p202, %s20, 1
          %p204 = scmp.lt.s32.totalorder %s201, 15
          %s205 = scalar_select %p204, %s201, 15
          %p206 = scmp.lt.s32.totalorder %s22, 0
          %s207 = scalar_select %p206, %s22, 0
          %s208 = sadd.s32 %s207, %s205
          %s209 = smul.addr %s203, 16
          %s210 = sadd.s32 %s208, %s209
          %s211 = smul.addr %s210, 8
          %s212 = scalar_lea.vmem %s1, %s211
          %s213 = smul.u32 16, %s21
        $region32: #{tpu_custom_call.1} parent=23 // pred_fallthru
          _
      $region24: #{tpu_custom_call.1} parent=5 // pred_fallthru
        _
      %p214 = scmp.le.s32.totalorder 1, %s13
      %p215 = scmp.lt.s32.totalorder %s13, 3
      %p216 = pnand %p214, %p215
      %p217 = pneg %p216
      // Predicated region
      $region33: #{tpu_custom_call.1} parent=5 // pred_check
        _
      $region34: #{tpu_custom_call.1} parent=5 // pred_check_branch
        %219 = sbr.rel (%p216) target = $region36
      $region35: #{tpu_custom_call.1} parent=5 // pred_region
        %s220 = ssub.s32 %s13, 1
        %s221 = smul.u32 16, %s25
        %p222 = scmp.lt.s32.totalorder %s23, 1
        %s223 = scalar_select %p222, %s23, 1
        %p224 = scmp.lt.s32.totalorder %s221, 15
        %s225 = scalar_select %p224, %s221, 15
        %s226 = smul.addr %s223, 16
        %s227 = sadd.s32 %s225, %s226
        %s228 = smul.addr %s227, 8
        %s229 = scalar_lea.vmem %s0, %s228
        %p230 = pneg %p60
        %p231 = pneg %p57
        %s232 = smul.u32 16, %s24
        %p233 = scmp.lt.s32.totalorder %s23, 1
        %s234 = scalar_select %p233, %s23, 1
        %p235 = scmp.lt.s32.totalorder %s232, 15
        %s236 = scalar_select %p235, %s232, 15
        %p237 = scmp.lt.s32.totalorder %s25, 0
        %s238 = scalar_select %p237, %s25, 0
        %s239 = sadd.s32 %s238, %s236
        %s240 = smul.addr %s234, 16
        %s241 = sadd.s32 %s239, %s240
        %s242 = smul.addr %s241, 8
        %s243 = scalar_lea.vmem %s1, %s242
        %p244 = pneg %p90
        %p245 = pneg %p87
        %p246 = pneg %p111
        %p247 = pneg %p108
        %p248 = pneg %p132
        %p249 = pneg %p129
        %p250 = pneg %p160
        %p251 = pneg %p157
        %s252 = sand.u32 %s147, 1
        %s253 = scalar_lea.sflag [#allocation4], %s252
        %s254 = sand.u32 %s147, 1
        %s255 = smul.addr %s254, 128
        %s256 = scalar_lea.vmem [#allocation3], %s255
        %s257 = smul.u32 16, %s25
        %p258 = scmp.lt.s32.totalorder %s23, 1
        %s259 = scalar_select %p258, %s23, 1
        %p260 = scmp.lt.s32.totalorder %s257, 15
        %s261 = scalar_select %p260, %s257, 15
        %s262 = smul.addr %s259, 16
        %s263 = sadd.s32 %s261, %s262
        %s264 = smul.addr %s263, 8
        %s265 = scalar_lea.vmem %s0, %s264
        %s266 = smul.u32 16, %s25
        %s267 = smul.u32 16, %s24
        %p268 = scmp.lt.s32.totalorder %s23, 1
        %s269 = scalar_select %p268, %s23, 1
        %p270 = scmp.lt.s32.totalorder %s267, 15
        %s271 = scalar_select %p270, %s267, 15
        %p272 = scmp.lt.s32.totalorder %s25, 0
        %s273 = scalar_select %p272, %s25, 0
        %s274 = sadd.s32 %s273, %s271
        %s275 = smul.addr %s269, 16
        %s276 = sadd.s32 %s274, %s275
        %s277 = smul.addr %s276, 8
        %s278 = scalar_lea.vmem %s1, %s277
        %s279 = smul.u32 16, %s24
        %s280 = smul.u32 16, %s24
        %p281 = scmp.eq.s32.totalorder %s25, 0
        // Predicated region
        $region37: #{tpu_custom_call.1} parent=35 // pred_check
          %p282 = pneg %p281
        $region38: #{tpu_custom_call.1} parent=35 // pred_check_branch
          %284 = sbr.rel (%p282) target = $region40
        $region39: #{tpu_custom_call.1} parent=35 // pred_region
          %285 = vst [vmem:[#allocation2] sm:$0xff] 0.0
          %286 = vst [vmem:[#allocation2 + $0x8] sm:$0xff] 0.0
          %287 = vst [vmem:[#allocation2 + $0x10] sm:$0xff] 0.0
          %288 = vst [vmem:[#allocation2 + $0x18] sm:$0xff] 0.0
          %289 = vst [vmem:[#allocation2 + $0x20] sm:$0xff] 0.0
          %290 = vst [vmem:[#allocation2 + $0x28] sm:$0xff] 0.0
          %291 = vst [vmem:[#allocation2 + $0x30] sm:$0xff] 0.0
          %292 = vst [vmem:[#allocation2 + $0x38] sm:$0xff] 0.0
          %293 = vst [vmem:[#allocation2 + $0x40] sm:$0xff] 0.0
          %294 = vst [vmem:[#allocation2 + $0x48] sm:$0xff] 0.0
          %295 = vst [vmem:[#allocation2 + $0x50] sm:$0xff] 0.0
          %296 = vst [vmem:[#allocation2 + $0x58] sm:$0xff] 0.0
          %297 = vst [vmem:[#allocation2 + $0x60] sm:$0xff] 0.0
          %298 = vst [vmem:[#allocation2 + $0x68] sm:$0xff] 0.0
          %299 = vst [vmem:[#allocation2 + $0x70] sm:$0xff] 0.0
          %300 = vst [vmem:[#allocation2 + $0x78] sm:$0xff] 0.0
        $region40: #{tpu_custom_call.1} parent=35 // pred_fallthru
          _
        %v301 = vld [vmem:[%s265] sm:$0xff]
        %v302 = vld [vmem:[%s265 + $0x8] sm:$0xff]
        %v303 = vld [vmem:[%s265 + $0x10] sm:$0xff]
        %v304 = vld [vmem:[%s265 + $0x18] sm:$0xff]
        %v305 = vld [vmem:[%s265 + $0x20] sm:$0xff]
        %v306 = vld [vmem:[%s265 + $0x28] sm:$0xff]
        %v307 = vld [vmem:[%s265 + $0x30] sm:$0xff]
        %v308 = vld [vmem:[%s265 + $0x38] sm:$0xff]
        %v309 = vld [vmem:[%s265 + $0x40] sm:$0xff]
        %v310 = vld [vmem:[%s265 + $0x48] sm:$0xff]
        %v311 = vld [vmem:[%s265 + $0x50] sm:$0xff]
        %v312 = vld [vmem:[%s265 + $0x58] sm:$0xff]
        %v313 = vld [vmem:[%s265 + $0x60] sm:$0xff]
        %v314 = vld [vmem:[%s265 + $0x68] sm:$0xff]
        %v315 = vld [vmem:[%s265 + $0x70] sm:$0xff]
        %v316 = vld [vmem:[%s265 + $0x78] sm:$0xff]
        %v317 = vld [vmem:[%s278] sm:$0xff]
        %v318 = vld [vmem:[%s278 + $0x8] sm:$0xff]
        %v319 = vld [vmem:[%s278 + $0x10] sm:$0xff]
        %v320 = vld [vmem:[%s278 + $0x18] sm:$0xff]
        %v321 = vld [vmem:[%s278 + $0x20] sm:$0xff]
        %v322 = vld [vmem:[%s278 + $0x28] sm:$0xff]
        %v323 = vld [vmem:[%s278 + $0x30] sm:$0xff]
        %v324 = vld [vmem:[%s278 + $0x38] sm:$0xff]
        %v325 = vld [vmem:[%s278 + $0x40] sm:$0xff]
        %v326 = vld [vmem:[%s278 + $0x48] sm:$0xff]
        %v327 = vld [vmem:[%s278 + $0x50] sm:$0xff]
        %v328 = vld [vmem:[%s278 + $0x58] sm:$0xff]
        %v329 = vld [vmem:[%s278 + $0x60] sm:$0xff]
        %v330 = vld [vmem:[%s278 + $0x68] sm:$0xff]
        %v331 = vld [vmem:[%s278 + $0x70] sm:$0xff]
        %v332 = vld [vmem:[%s278 + $0x78] sm:$0xff]
        %v333 = vld [vmem:[%s2] sm:$0xff]
        %v334 = vld [vmem:[%s2 + $0x8] sm:$0xff]
        %vm335 = vcmask 130048
        %v337 = vsel %vm335, %v301, 0
        %v340 = vsel %vm335, %v302, 0
        %v343 = vsel %vm335, %v303, 0
        %v346 = vsel %vm335, %v304, 0
        %v349 = vsel %vm335, %v305, 0
        %v352 = vsel %vm335, %v306, 0
        %v355 = vsel %vm335, %v307, 0
        %v358 = vsel %vm335, %v308, 0
        %v361 = vsel %vm335, %v309, 0
        %v364 = vsel %vm335, %v310, 0
        %v367 = vsel %vm335, %v311, 0
        %v370 = vsel %vm335, %v312, 0
        %v373 = vsel %vm335, %v313, 0
        %v376 = vsel %vm335, %v314, 0
        %v379 = vsel %vm335, %v315, 0
        %v382 = vsel %vm335, %v316, 0
        %384 = vmatpush.msra.mxu0 0.0
        %385 = vmatpush.msra.mxu0 0.0
        %386 = vmatpush.msra.mxu0 0.0
        %387 = vmatpush.msra.mxu0 0.0
        %388 = vmatpush.msra.mxu0 0.0
        %389 = vmatpush.msra.mxu0 0.0
        %390 = vmatpush.msra.mxu0 0.0
        %391 = vmatpush.msra.mxu0 0.0
        %392 = vmatpush.msra.mxu0 0.0
        %393 = vmatpush.msra.mxu0 0.0
        %394 = vmatpush.msra.mxu0 0.0
        %395 = vmatpush.msra.mxu0 0.0
        %396 = vmatpush.msra.mxu0 0.0
        %397 = vmatpush.msra.mxu0 0.0
        %398 = vmatpush.msra.mxu0 %v334
        %399 = vmatpush.msra.mxu0 %v333
        %400 = vmatmul.f32.gmra.mxu0 %v337
        %v401 = vpop.f32.mrf.mxu0
        %v402 = vadd.f32 0.0, %v401
        %403 = vmatmul.f32.gmra.mxu0 %v340
        %v404 = vpop.f32.mrf.mxu0
        %v405 = vadd.f32 0.0, %v404
        %406 = vmatmul.f32.gmra.mxu0 %v343
        %v407 = vpop.f32.mrf.mxu0
        %v408 = vadd.f32 0.0, %v407
        %409 = vmatmul.f32.gmra.mxu0 %v346
        %v410 = vpop.f32.mrf.mxu0
        %v411 = vadd.f32 0.0, %v410
        %412 = vmatmul.f32.gmra.mxu0 %v349
        %v413 = vpop.f32.mrf.mxu0
        %v414 = vadd.f32 0.0, %v413
        %415 = vmatmul.f32.gmra.mxu0 %v352
        %v416 = vpop.f32.mrf.mxu0
        %v417 = vadd.f32 0.0, %v416
        %418 = vmatmul.f32.gmra.mxu0 %v355
        %v419 = vpop.f32.mrf.mxu0
        %v420 = vadd.f32 0.0, %v419
        %421 = vmatmul.f32.gmra.mxu0 %v358
        %v422 = vpop.f32.mrf.mxu0
        %v423 = vadd.f32 0.0, %v422
        %424 = vmatmul.f32.gmra.mxu0 %v361
        %v425 = vpop.f32.mrf.mxu0
        %v426 = vadd.f32 0.0, %v425
        %427 = vmatmul.f32.gmra.mxu0 %v364
        %v428 = vpop.f32.mrf.mxu0
        %v429 = vadd.f32 0.0, %v428
        %430 = vmatmul.f32.gmra.mxu0 %v367
        %v431 = vpop.f32.mrf.mxu0
        %v432 = vadd.f32 0.0, %v431
        %433 = vmatmul.f32.gmra.mxu0 %v370
        %v434 = vpop.f32.mrf.mxu0
        %v435 = vadd.f32 0.0, %v434
        %436 = vmatmul.f32.gmra.mxu0 %v373
        %v437 = vpop.f32.mrf.mxu0
        %v438 = vadd.f32 0.0, %v437
        %439 = vmatmul.f32.gmra.mxu0 %v376
        %v440 = vpop.f32.mrf.mxu0
        %v441 = vadd.f32 0.0, %v440
        %442 = vmatmul.f32.gmra.mxu0 %v379
        %v443 = vpop.f32.mrf.mxu0
        %v444 = vadd.f32 0.0, %v443
        %445 = vmatmul.f32.gmra.mxu0 %v382
        %v446 = vpop.f32.mrf.mxu0
        %v447 = vadd.f32 0.0, %v446
        %448 = vdwg.mxu0
        %v449 = vld [vmem:[#allocation2] sm:$0xff]
        %v450 = vld [vmem:[#allocation2 + $0x8] sm:$0xff]
        %v451 = vld [vmem:[#allocation2 + $0x10] sm:$0xff]
        %v452 = vld [vmem:[#allocation2 + $0x18] sm:$0xff]
        %v453 = vld [vmem:[#allocation2 + $0x20] sm:$0xff]
        %v454 = vld [vmem:[#allocation2 + $0x28] sm:$0xff]
        %v455 = vld [vmem:[#allocation2 + $0x30] sm:$0xff]
        %v456 = vld [vmem:[#allocation2 + $0x38] sm:$0xff]
        %v457 = vld [vmem:[#allocation2 + $0x40] sm:$0xff]
        %v458 = vld [vmem:[#allocation2 + $0x48] sm:$0xff]
        %v459 = vld [vmem:[#allocation2 + $0x50] sm:$0xff]
        %v460 = vld [vmem:[#allocation2 + $0x58] sm:$0xff]
        %v461 = vld [vmem:[#allocation2 + $0x60] sm:$0xff]
        %v462 = vld [vmem:[#allocation2 + $0x68] sm:$0xff]
        %v463 = vld [vmem:[#allocation2 + $0x70] sm:$0xff]
        %v464 = vld [vmem:[#allocation2 + $0x78] sm:$0xff]
        %465 = vmatpush.msra.mxu0 %v447
        %466 = vmatpush.msra.mxu0 %v444
        %467 = vmatpush.msra.mxu0 %v441
        %468 = vmatpush.msra.mxu0 %v438
        %469 = vmatpush.msra.mxu0 %v435
        %470 = vmatpush.msra.mxu0 %v432
        %471 = vmatpush.msra.mxu0 %v429
        %472 = vmatpush.msra.mxu0 %v426
        %473 = vmatpush.msra.mxu0 %v423
        %474 = vmatpush.msra.mxu0 %v420
        %475 = vmatpush.msra.mxu0 %v417
        %476 = vmatpush.msra.mxu0 %v414
        %477 = vmatpush.msra.mxu0 %v411
        %478 = vmatpush.msra.mxu0 %v408
        %479 = vmatpush.msra.mxu0 %v405
        %480 = vmatpush.msra.mxu0 %v402
        %481 = vmatmul.f32.gmra.mxu0 %v317
        %v482 = vpop.f32.mrf.mxu0
        %v483 = vadd.f32 0.0, %v482
        %484 = vmatmul.f32.gmra.mxu0 %v318
        %v485 = vpop.f32.mrf.mxu0
        %v486 = vadd.f32 0.0, %v485
        %487 = vmatmul.f32.gmra.mxu0 %v319
        %v488 = vpop.f32.mrf.mxu0
        %v489 = vadd.f32 0.0, %v488
        %490 = vmatmul.f32.gmra.mxu0 %v320
        %v491 = vpop.f32.mrf.mxu0
        %v492 = vadd.f32 0.0, %v491
        %493 = vmatmul.f32.gmra.mxu0 %v321
        %v494 = vpop.f32.mrf.mxu0
        %v495 = vadd.f32 0.0, %v494
        %496 = vmatmul.f32.gmra.mxu0 %v322
        %v497 = vpop.f32.mrf.mxu0
        %v498 = vadd.f32 0.0, %v497
        %499 = vmatmul.f32.gmra.mxu0 %v323
        %v500 = vpop.f32.mrf.mxu0
        %v501 = vadd.f32 0.0, %v500
        %502 = vmatmul.f32.gmra.mxu0 %v324
        %v503 = vpop.f32.mrf.mxu0
        %v504 = vadd.f32 0.0, %v503
        %505 = vmatmul.f32.gmra.mxu0 %v325
        %v506 = vpop.f32.mrf.mxu0
        %v507 = vadd.f32 0.0, %v506
        %508 = vmatmul.f32.gmra.mxu0 %v326
        %v509 = vpop.f32.mrf.mxu0
        %v510 = vadd.f32 0.0, %v509
        %511 = vmatmul.f32.gmra.mxu0 %v327
        %v512 = vpop.f32.mrf.mxu0
        %v513 = vadd.f32 0.0, %v512
        %514 = vmatmul.f32.gmra.mxu0 %v328
        %v515 = vpop.f32.mrf.mxu0
        %v516 = vadd.f32 0.0, %v515
        %517 = vmatmul.f32.gmra.mxu0 %v329
        %v518 = vpop.f32.mrf.mxu0
        %v519 = vadd.f32 0.0, %v518
        %520 = vmatmul.f32.gmra.mxu0 %v330
        %v521 = vpop.f32.mrf.mxu0
        %v522 = vadd.f32 0.0, %v521
        %523 = vmatmul.f32.gmra.mxu0 %v331
        %v524 = vpop.f32.mrf.mxu0
        %v525 = vadd.f32 0.0, %v524
        %526 = vmatmul.f32.gmra.mxu0 %v332
        %v527 = vpop.f32.mrf.mxu0
        %v528 = vadd.f32 0.0, %v527
        %529 = vdwg.mxu0
        %v530 = vadd.f32 %v449, %v483
        %v531 = vadd.f32 %v450, %v486
        %v532 = vadd.f32 %v451, %v489
        %v533 = vadd.f32 %v452, %v492
        %v534 = vadd.f32 %v453, %v495
        %v535 = vadd.f32 %v454, %v498
        %v536 = vadd.f32 %v455, %v501
        %v537 = vadd.f32 %v456, %v504
        %v538 = vadd.f32 %v457, %v507
        %v539 = vadd.f32 %v458, %v510
        %v540 = vadd.f32 %v459, %v513
        %v541 = vadd.f32 %v460, %v516
        %v542 = vadd.f32 %v461, %v519
        %v543 = vadd.f32 %v462, %v522
        %v544 = vadd.f32 %v463, %v525
        %v545 = vadd.f32 %v464, %v528
        %546 = vst [vmem:[#allocation2] sm:$0xff] %v530
        %547 = vst [vmem:[#allocation2 + $0x8] sm:$0xff] %v531
        %548 = vst [vmem:[#allocation2 + $0x10] sm:$0xff] %v532
        %549 = vst [vmem:[#allocation2 + $0x18] sm:$0xff] %v533
        %550 = vst [vmem:[#allocation2 + $0x20] sm:$0xff] %v534
        %551 = vst [vmem:[#allocation2 + $0x28] sm:$0xff] %v535
        %552 = vst [vmem:[#allocation2 + $0x30] sm:$0xff] %v536
        %553 = vst [vmem:[#allocation2 + $0x38] sm:$0xff] %v537
        %554 = vst [vmem:[#allocation2 + $0x40] sm:$0xff] %v538
        %555 = vst [vmem:[#allocation2 + $0x48] sm:$0xff] %v539
        %556 = vst [vmem:[#allocation2 + $0x50] sm:$0xff] %v540
        %557 = vst [vmem:[#allocation2 + $0x58] sm:$0xff] %v541
        %558 = vst [vmem:[#allocation2 + $0x60] sm:$0xff] %v542
        %559 = vst [vmem:[#allocation2 + $0x68] sm:$0xff] %v543
        %560 = vst [vmem:[#allocation2 + $0x70] sm:$0xff] %v544
        %561 = vst [vmem:[#allocation2 + $0x78] sm:$0xff] %v545
        // Predicated region
        $region41: #{tpu_custom_call.1} parent=35 // pred_check
          %p562 = pneg %p281
        $region42: #{tpu_custom_call.1} parent=35 // pred_check_branch
          %564 = sbr.rel (%p562) target = $region44
        $region43: #{tpu_custom_call.1} parent=35 // pred_region
          %v565 = vld [vmem:[#allocation2] sm:$0xff]
          %v566 = vld [vmem:[#allocation2 + $0x8] sm:$0xff]
          %v567 = vld [vmem:[#allocation2 + $0x10] sm:$0xff]
          %v568 = vld [vmem:[#allocation2 + $0x18] sm:$0xff]
          %v569 = vld [vmem:[#allocation2 + $0x20] sm:$0xff]
          %v570 = vld [vmem:[#allocation2 + $0x28] sm:$0xff]
          %v571 = vld [vmem:[#allocation2 + $0x30] sm:$0xff]
          %v572 = vld [vmem:[#allocation2 + $0x38] sm:$0xff]
          %v573 = vld [vmem:[#allocation2 + $0x40] sm:$0xff]
          %v574 = vld [vmem:[#allocation2 + $0x48] sm:$0xff]
          %v575 = vld [vmem:[#allocation2 + $0x50] sm:$0xff]
          %v576 = vld [vmem:[#allocation2 + $0x58] sm:$0xff]
          %v577 = vld [vmem:[#allocation2 + $0x60] sm:$0xff]
          %v578 = vld [vmem:[#allocation2 + $0x68] sm:$0xff]
          %v579 = vld [vmem:[#allocation2 + $0x70] sm:$0xff]
          %v580 = vld [vmem:[#allocation2 + $0x78] sm:$0xff]
          %v581 = vld [vmem:[%s3] sm:$0x1]
          %v583 = vperm.slane %v581, 0
          %v585 = vadd.f32 %v565, %v583
          %v586 = vadd.f32 %v566, %v583
          %v587 = vadd.f32 %v567, %v583
          %v588 = vadd.f32 %v568, %v583
          %v589 = vadd.f32 %v569, %v583
          %v590 = vadd.f32 %v570, %v583
          %v591 = vadd.f32 %v571, %v583
          %v592 = vadd.f32 %v572, %v583
          %v593 = vadd.f32 %v573, %v583
          %v594 = vadd.f32 %v574, %v583
          %v595 = vadd.f32 %v575, %v583
          %v596 = vadd.f32 %v576, %v583
          %v597 = vadd.f32 %v577, %v583
          %v598 = vadd.f32 %v578, %v583
          %v599 = vadd.f32 %v579, %v583
          %v600 = vadd.f32 %v580, %v583
          %601 = vst [vmem:[%s256] sm:$0xff] %v585
          %602 = vst [vmem:[%s256 + $0x8] sm:$0xff] %v586
          %603 = vst [vmem:[%s256 + $0x10] sm:$0xff] %v587
          %604 = vst [vmem:[%s256 + $0x18] sm:$0xff] %v588
          %605 = vst [vmem:[%s256 + $0x20] sm:$0xff] %v589
          %606 = vst [vmem:[%s256 + $0x28] sm:$0xff] %v590
          %607 = vst [vmem:[%s256 + $0x30] sm:$0xff] %v591
          %608 = vst [vmem:[%s256 + $0x38] sm:$0xff] %v592
          %609 = vst [vmem:[%s256 + $0x40] sm:$0xff] %v593
          %610 = vst [vmem:[%s256 + $0x48] sm:$0xff] %v594
          %611 = vst [vmem:[%s256 + $0x50] sm:$0xff] %v595
          %612 = vst [vmem:[%s256 + $0x58] sm:$0xff] %v596
          %613 = vst [vmem:[%s256 + $0x60] sm:$0xff] %v597
          %614 = vst [vmem:[%s256 + $0x68] sm:$0xff] %v598
          %615 = vst [vmem:[%s256 + $0x70] sm:$0xff] %v599
          %616 = vst [vmem:[%s256 + $0x78] sm:$0xff] %v600
        $region44: #{tpu_custom_call.1} parent=35 // pred_fallthru
          _
        %s617 = sand.u32 %s147, 1
        %s618 = scalar_lea.sflag [#allocation4], %s617
        %s619 = sand.u32 %s147, 1
        %s620 = smul.addr %s619, 128
        %s621 = scalar_lea.vmem [#allocation3], %s620
        // Predicated region
        $region45: #{tpu_custom_call.1} parent=35 // pred_check
          %p622 = pneg %p157
        $region46: #{tpu_custom_call.1} parent=35 // pred_check_branch
          %624 = sbr.rel (%p622) target = $region48
        $region47: #{tpu_custom_call.1} parent=35 // pred_region
          %s625 = smul.u32 16, %s24
          %627 = vsyncadd %s618, 0
          %s628 = smul.addr %s23, 16
          %s629 = sadd.s32 %s625, %s628
          %s630 = smul.addr %s629, 8
          %s631 = scalar_lea.hbm %s4, %s630
          %s632 = sshll.u32 %s621, 4
          %s633 = int_to_ptr.vmem [resolvable:$true] %s632
          %s634 = sshll.u32 %s631, 4
          %s635 = int_to_ptr.hbm [resolvable:$true] %s634
          %640 = dma.vmem_to_hbm [thread:$0]  %s633, 2048, %s635, %s618, 128, 128, 8
        $region48: #{tpu_custom_call.1} parent=35 // pred_fallthru
          _
      $region36: #{tpu_custom_call.1} parent=5 // pred_fallthru
        _
      %p641 = scmp.le.s32.totalorder 2, %s13
      // Predicated region
      $region49: #{tpu_custom_call.1} parent=5 // pred_check
        %p642 = pneg %p641
      $region50: #{tpu_custom_call.1} parent=5 // pred_check_branch
        %644 = sbr.rel (%p642) target = $region52
      $region51: #{tpu_custom_call.1} parent=5 // pred_region
        %s645 = ssub.s32 %s13, 2
        // Predicated region
        $region53: #{tpu_custom_call.1} parent=51 // pred_check
          %p646 = pneg %p163
        $region54: #{tpu_custom_call.1} parent=51 // pred_check_branch
          %648 = sbr.rel (%p646) target = $region56
        $region55: #{tpu_custom_call.1} parent=51 // pred_region
          %s649 = sand.u32 %s148, 1
          %s650 = scalar_lea.sflag [#allocation4], %s649
          %s651 = sand.u32 %s148, 1
          %s652 = smul.addr %s651, 128
          %s653 = scalar_lea.vmem [#allocation3], %s652
          %655 = dma.done %s650, 2048
        $region56: #{tpu_custom_call.1} parent=51 // pred_fallthru
          _
      $region52: #{tpu_custom_call.1} parent=5 // pred_fallthru
        _
    $region6: #{tpu_custom_call.1} parent=1 // loop_footer
      %s17 = sadd.s32 1, %s13
    $region7: #{tpu_custom_call.1} parent=1 // loop_footer_branch
      %12 = sbr.rel target = $region3
    $region8: #{tpu_custom_call.1} parent=1 // loop_exit
      _
    %656 = vsyncpa [#allocation4], 1
    %s657 = scalar_lea.sflag [#allocation4], 1
    %658 = vsyncpa %s657, 1

</llo_original>
